<compile_context>
chip_gen: v6e
topology: v6e:2x2x1
jax: 0.10.0
libtpu: 0.0.40
codegen_flags: <defaults>
</compile_context>

<pallas_src>
import jax
import jax.numpy as jnp
import numpy as np
from jax.experimental import pallas as pl
from jax.experimental.pallas import tpu as pltpu


def _asp_kernel(x_ref, w1_ref, b1_ref, w2_ref, b2_ref, out_ref,
                m_sc, z_sc, s1_sc, s2_sc):
    # x_ref: (C, tT); w1_ref: (A, C); b1_ref: (A, 1); w2_ref: (C, A) (BN folded);
    # b2_ref: (C, 1) (BN folded); out_ref: (2C, 1).
    # Scratch (persistent per batch element): running max, sum(e), sum(x*e),
    # sum((x*e)^2), all (C, 1) f32.
    t = pl.program_id(1)
    C = x_ref.shape[0]

    @pl.when(t == 0)
    def _init():
        m_sc[...] = jnp.full_like(m_sc, -jnp.inf)
        z_sc[...] = jnp.zeros_like(z_sc)
        s1_sc[...] = jnp.zeros_like(s1_sc)
        s2_sc[...] = jnp.zeros_like(s2_sc)

    x = x_ref[...]                                                  # (C, tT)

    # Attention logits for this T tile (BatchNorm already folded into w2/b2).
    h = jnp.dot(w1_ref[...], x, preferred_element_type=jnp.float32) + b1_ref[...]
    h = jnp.maximum(h, 0.0)                                         # (A, tT)
    logits = (jnp.dot(w2_ref[...], h, preferred_element_type=jnp.float32)
              + b2_ref[...])                                        # (C, tT)

    # Online (running-max) softmax accumulation; normalization deferred.
    m_prev = m_sc[...]                                              # (C, 1)
    m_new = jnp.maximum(m_prev, jnp.max(logits, axis=-1, keepdims=True))
    alpha = jnp.exp(m_prev - m_new)                                 # rescale old sums
    e = jnp.exp(logits - m_new)                                     # (C, tT), unnormalized
    xe = x * e                                                      # (C, tT)

    m_sc[...] = m_new
    z_sc[...] = alpha * z_sc[...] + jnp.sum(e, axis=-1, keepdims=True)
    s1_sc[...] = alpha * s1_sc[...] + jnp.sum(xe, axis=-1, keepdims=True)
    # The module squares the *weighted* signal (sum_t (x*attn)^2), so the old
    # partial sum rescales by alpha**2.
    s2_sc[...] = (alpha * alpha) * s2_sc[...] + jnp.sum(xe * xe, axis=-1, keepdims=True)

    @pl.when(t == pl.num_programs(1) - 1)
    def _finalize():
        z = z_sc[...]
        r_z = pl.reciprocal(z, approx=True)        # EUP slot, ~2^-12 rel. error
        r_z = r_z * (2.0 - z * r_z)                # one Newton step -> ~f32 accuracy
        mean = s1_sc[...] * r_z                    # (C, 1)
        var = s2_sc[...] * (r_z * r_z) - mean * mean
        var = jnp.maximum(var, 1e-5)
        std = jnp.sqrt(var)
        # Slice stores, no jnp.concatenate / extra VMEM copy.
        out_ref[0:C, :] = mean
        out_ref[C:2 * C, :] = std


def attentive_stats_pool(x, params, *, tile_t=512):
    """x: (B, C, T) float32 -> (B, 2*C) float32 (eval-mode BatchNorm)."""
    B, C, T = x.shape
    w1, b1 = params["w1"], params["b1"]
    gamma, beta = params["gamma"], params["beta"]
    run_mean, run_var = params["run_mean"], params["run_var"]
    w2, b2 = params["w2"], params["b2"]
    A = w1.shape[0]
    bn_eps = 1e-5

    # ---- Fold eval-mode BatchNorm1d into the second 1x1 conv (pure algebra):
    #      w2 @ (inv*h + shift) + b2 == (w2 * inv) @ h + (w2 @ shift + b2).
    inv = gamma / jnp.sqrt(run_var + bn_eps)                 # (A,)
    shift = beta - run_mean * inv                            # (A,)
    w2f = (w2 * inv[None, :]).astype(jnp.float32)            # (C, A)
    b2f = (b2 + w2 @ shift).astype(jnp.float32)              # (C,)

    b1c = b1.reshape(A, 1).astype(jnp.float32)
    b2c = b2f.reshape(C, 1)

    # ---- T tiling on the lane axis: multiple of 128 that divides T,
    #      otherwise fall back to a single full-T tile (always legal).
    tile_t = min(tile_t, T)
    if tile_t != T and (tile_t % 128 != 0 or T % tile_t != 0):
        tile_t = T
    n_t = T // tile_t

    # Rough per-step VMEM need (x/weights are double-buffered by the pipeline).
    vmem_est = 4 * (2 * C * tile_t                      # x tile, double buffered
                    + 2 * (A * C + C * A + A + C)       # weights / biases
                    + 8 * C                             # accumulators + output
                    + (A + 3 * C) * tile_t)             # in-kernel temporaries
    vmem_limit = int(min(max(2 * vmem_est, 32 * 1024 * 1024), 64 * 1024 * 1024))

    out = pl.pallas_call(
        _asp_kernel,
        out_shape=jax.ShapeDtypeStruct((B, 2 * C, 1), jnp.float32),
        grid_spec=pltpu.PrefetchScalarGridSpec(
            num_scalar_prefetch=0,
            grid=(B, n_t),
            in_specs=[
                pl.BlockSpec((pl.Squeezed(), C, tile_t), lambda b, t: (b, 0, t)),  # x
                # Constant-index blocks below are fetched once and re-used across
                # grid steps (the pipeline skips the re-DMA when the block index
                # does not change); they could additionally be single-buffered to
                # save VMEM at large A*C.
                pl.BlockSpec((A, C), lambda b, t: (0, 0)),   # w1
                pl.BlockSpec((A, 1), lambda b, t: (0, 0)),   # b1
                pl.BlockSpec((C, A), lambda b, t: (0, 0)),   # w2 (BN folded)
                pl.BlockSpec((C, 1), lambda b, t: (0, 0)),   # b2 (BN folded)
            ],
            out_specs=pl.BlockSpec((pl.Squeezed(), 2 * C, 1), lambda b, t: (b, 0, 0)),
            scratch_shapes=[
                pltpu.VMEM((C, 1), jnp.float32),   # running max
                pltpu.VMEM((C, 1), jnp.float32),   # running sum(e)
                pltpu.VMEM((C, 1), jnp.float32),   # running sum(x*e)
                pltpu.VMEM((C, 1), jnp.float32),   # running sum((x*e)^2)
            ],
        ),
        compiler_params=pltpu.CompilerParams(
            dimension_semantics=("parallel", "arbitrary"),
            vmem_limit_bytes=vmem_limit,
        ),
    )(x, w1, b1c, w2f, b2c)

    return out.reshape(B, 2 * C)


def _reference_faithful(x, params):
    """Pure-JAX reference, literal PyTorch forward (explicit eval-mode BN)."""
    w1, b1 = params["w1"], params["b1"]
    gamma, beta = params["gamma"], params["beta"]
    rm, rv = params["run_mean"], params["run_var"]
    w2, b2 = params["w2"], params["b2"]
    h = jnp.einsum("ac,bct->bat", w1, x) + b1[None, :, None]
    h = jnp.maximum(h, 0.0)
    h = (h - rm[None, :, None]) / jnp.sqrt(rv[None, :, None] + 1e-5)
    h = h * gamma[None, :, None] + beta[None, :, None]
    logits = jnp.einsum("ca,bat->bct", w2, h) + b2[None, :, None]
    attn = jax.nn.softmax(logits, axis=2)
    wx = x * attn
    mean = jnp.sum(wx, axis=2, keepdims=True)
    var = jnp.maximum(jnp.sum(wx ** 2, axis=2, keepdims=True) - mean ** 2, 1e-5)
    pooled = jnp.concatenate([mean, jnp.sqrt(var)], axis=1)
    return pooled.reshape(pooled.shape[0], -1)


def _reference_folded(x, params):
    """Same forward with BN pre-folded into conv2 (same algebra as the wrapper)."""
    w1, b1 = params["w1"], params["b1"]
    gamma, beta = params["gamma"], params["beta"]
    rm, rv = params["run_mean"], params["run_var"]
    w2, b2 = params["w2"], params["b2"]
    inv = gamma / jnp.sqrt(rv + 1e-5)
    w2f = w2 * inv[None, :]
    b2f = b2 + w2 @ (beta - rm * inv)
    h = jnp.maximum(jnp.einsum("ac,bct->bat", w1, x) + b1[None, :, None], 0.0)
    logits = jnp.einsum("ca,bat->bct", w2f, h) + b2f[None, :, None]
    attn = jax.nn.softmax(logits, axis=2)
    wx = x * attn
    mean = jnp.sum(wx, axis=2, keepdims=True)
    var = jnp.maximum(jnp.sum(wx ** 2, axis=2, keepdims=True) - mean ** 2, 1e-5)
    pooled = jnp.concatenate([mean, jnp.sqrt(var)], axis=1)
    return pooled.reshape(pooled.shape[0], -1)


def init_params(key, in_dim, attention_channels):
    k1, k2, k3, k4, k5, k6, k7, k8 = jax.random.split(key, 8)
    A, C = attention_channels, in_dim
    return {
        "w1": 0.1 * jax.random.normal(k1, (A, C), jnp.float32),
        "b1": 0.1 * jax.random.normal(k2, (A,), jnp.float32),
        # Non-trivial BN stats so the BN-folding path is actually exercised.
        "gamma": 1.0 + 0.1 * jax.random.normal(k5, (A,), jnp.float32),
        "beta": 0.1 * jax.random.normal(k6, (A,), jnp.float32),
        "run_mean": 0.1 * jax.random.normal(k7, (A,), jnp.float32),
        "run_var": 1.0 + 0.2 * jax.random.uniform(k8, (A,), jnp.float32),
        "w2": 0.1 * jax.random.normal(k3, (C, A), jnp.float32),
        "b2": 0.1 * jax.random.normal(k4, (C,), jnp.float32),
    }


if __name__ == "__main__":
    B, C, T = 2, 16, 384         # batch, in_dim (channels), time
    A = 32                       # attention_channels (small for the example)

    key = jax.random.PRNGKey(0)
    kx, kp = jax.random.split(key)
    x = jax.random.normal(kx, (B, C, T), jnp.float32)
    params = init_params(kp, C, A)

    # tile_t=128 -> 3 T-steps per batch element: exercises the online-softmax
    # accumulation / rescale path across grid iterations.
    out = attentive_stats_pool(x, params, tile_t=128)
    out = jax.block_until_ready(out)
    assert out.shape == (B, 2 * C)

    # Tight check against a reference using the same (exact) BN folding:
    # validates the kernel itself (tiling, online softmax, statistics, stores).
    ref_folded = _reference_folded(x, params)
    np.testing.assert_allclose(np.asarray(out), np.asarray(ref_folded),
                               rtol=1e-4, atol=1e-5)

    # Looser check against the literal PyTorch formulation (explicit BN). The
    # slack only absorbs TPU reduced-precision matmul defaults interacting with
    # the algebraic refactoring; the folding itself is exact algebra.
    ref = _reference_faithful(x, params)
    np.testing.assert_allclose(np.asarray(out), np.asarray(ref),
                               rtol=1e-2, atol=3e-3)

    print("KERNEL_OK")
</pallas_src>

<mosaic_0001>
module attributes {stable_mosaic.version = 11 : i64} {
  func.func @_asp_kernel(%arg0: i32, %arg1: i32, %arg2: memref<1x16x128xf32, #tpu.memory_space<vmem>>, %arg3: memref<32x16xf32, #tpu.memory_space<vmem>>, %arg4: memref<32x1xf32, #tpu.memory_space<vmem>>, %arg5: memref<16x32xf32, #tpu.memory_space<vmem>>, %arg6: memref<16x1xf32, #tpu.memory_space<vmem>>, %arg7: memref<1x32x1xf32, #tpu.memory_space<vmem>>, %arg8: memref<16x1xf32, #tpu.memory_space<vmem>>, %arg9: memref<16x1xf32, #tpu.memory_space<vmem>>, %arg10: memref<16x1xf32, #tpu.memory_space<vmem>>, %arg11: memref<16x1xf32, #tpu.memory_space<vmem>>) attributes {dimension_semantics = [#tpu.dimension_semantics<parallel>, #tpu.dimension_semantics<arbitrary>], iteration_bounds = array<i64: 2, 3>, scalar_prefetch = 0 : i64, scratch_operands = 4 : i64, tpu.core_type = #tpu.core_type<tc>, window_params = [{transform_indices = @transform_0, window_bounds = array<i64: 1, 16, 128>}, {pipeline_mode = #tpu.pipeline_mode<synchronous>, transform_indices = @transform_1, window_bounds = array<i64: 32, 16>}, {pipeline_mode = #tpu.pipeline_mode<synchronous>, transform_indices = @transform_2, window_bounds = array<i64: 32, 1>}, {pipeline_mode = #tpu.pipeline_mode<synchronous>, transform_indices = @transform_3, window_bounds = array<i64: 16, 32>}, {pipeline_mode = #tpu.pipeline_mode<synchronous>, transform_indices = @transform_4, window_bounds = array<i64: 16, 1>}, {transform_indices = @transform_5, window_bounds = array<i64: 1, 32, 1>}]} {
    %c0_i32 = arith.constant 0 : i32
    %0 = arith.cmpi eq, %arg1, %c0_i32 : i32
    %1 = arith.extui %0 : i1 to i32
    %c0_i32_0 = arith.constant 0 : i32
    %2 = arith.cmpi ne, %1, %c0_i32_0 : i32
    scf.if %2 {
      %cst_34 = arith.constant 0xFF800000 : f32
      %51 = vector.broadcast %cst_34 : f32 to vector<16x1xf32>
      %c0_35 = arith.constant 0 : index
      %c0_36 = arith.constant 0 : index
      %52 = vector.load %arg8[%c0_35, %c0_36] : memref<16x1xf32, #tpu.memory_space<vmem>>, vector<16x1xf32>
      tpu.vector_store %arg8[%c0_35, %c0_36], %51 {strides = array<i32>} : memref<16x1xf32, #tpu.memory_space<vmem>>, vector<16x1xf32>,
      %cst_37 = arith.constant 0.000000e+00 : f32
      %53 = vector.broadcast %cst_37 : f32 to vector<16x1xf32>
      %c0_38 = arith.constant 0 : index
      %c0_39 = arith.constant 0 : index
      %54 = vector.load %arg9[%c0_38, %c0_39] : memref<16x1xf32, #tpu.memory_space<vmem>>, vector<16x1xf32>
      tpu.vector_store %arg9[%c0_38, %c0_39], %53 {strides = array<i32>} : memref<16x1xf32, #tpu.memory_space<vmem>>, vector<16x1xf32>,
      %cst_40 = arith.constant 0.000000e+00 : f32
      %55 = vector.broadcast %cst_40 : f32 to vector<16x1xf32>
      %c0_41 = arith.constant 0 : index
      %c0_42 = arith.constant 0 : index
      %56 = vector.load %arg10[%c0_41, %c0_42] : memref<16x1xf32, #tpu.memory_space<vmem>>, vector<16x1xf32>
      tpu.vector_store %arg10[%c0_41, %c0_42], %55 {strides = array<i32>} : memref<16x1xf32, #tpu.memory_space<vmem>>, vector<16x1xf32>,
      %cst_43 = arith.constant 0.000000e+00 : f32
      %57 = vector.broadcast %cst_43 : f32 to vector<16x1xf32>
      %c0_44 = arith.constant 0 : index
      %c0_45 = arith.constant 0 : index
      %58 = vector.load %arg11[%c0_44, %c0_45] : memref<16x1xf32, #tpu.memory_space<vmem>>, vector<16x1xf32>
      tpu.vector_store %arg11[%c0_44, %c0_45], %57 {strides = array<i32>} : memref<16x1xf32, #tpu.memory_space<vmem>>, vector<16x1xf32>,
    } else {
    }
    %c0 = arith.constant 0 : index
    %c0_1 = arith.constant 0 : index
    %c0_2 = arith.constant 0 : index
    %3 = vector.load %arg2[%c0, %c0_1, %c0_2] : memref<1x16x128xf32, #tpu.memory_space<vmem>>, vector<1x16x128xf32>
    %4 = vector.shape_cast %3 : vector<1x16x128xf32> to vector<16x128xf32>
    %c0_3 = arith.constant 0 : index
    %c0_4 = arith.constant 0 : index
    %5 = vector.load %arg3[%c0_3, %c0_4] : memref<32x16xf32, #tpu.memory_space<vmem>>, vector<32x16xf32>
    %cst = arith.constant dense<0.000000e+00> : vector<32x128xf32>
    %6 = tpu.matmul %5, %4, %cst {dimension_numbers = #tpu.dot_dimension_numbers<[1], [0], [0], [1], [0, 0, 1, 1], [], []>} : vector<32x16xf32>, vector<16x128xf32>, vector<32x128xf32> -> vector<32x128xf32>
    %c0_5 = arith.constant 0 : index
    %c0_6 = arith.constant 0 : index
    %7 = vector.load %arg4[%c0_5, %c0_6] : memref<32x1xf32, #tpu.memory_space<vmem>>, vector<32x1xf32>
    %8 = vector.broadcast %7 : vector<32x1xf32> to vector<32x128xf32>
    %9 = arith.addf %6, %8 : vector<32x128xf32>
    %cst_7 = arith.constant 0.000000e+00 : f32
    %10 = vector.broadcast %cst_7 : f32 to vector<32x128xf32>
    %11 = arith.maximumf %9, %10 : vector<32x128xf32>
    %c0_8 = arith.constant 0 : index
    %c0_9 = arith.constant 0 : index
    %12 = vector.load %arg5[%c0_8, %c0_9] : memref<16x32xf32, #tpu.memory_space<vmem>>, vector<16x32xf32>
    %cst_10 = arith.constant dense<0.000000e+00> : vector<16x128xf32>
    %13 = tpu.matmul %12, %11, %cst_10 {dimension_numbers = #tpu.dot_dimension_numbers<[1], [0], [0], [1], [0, 0, 1, 1], [], []>} : vector<16x32xf32>, vector<32x128xf32>, vector<16x128xf32> -> vector<16x128xf32>
    %c0_11 = arith.constant 0 : index
    %c0_12 = arith.constant 0 : index
    %14 = vector.load %arg6[%c0_11, %c0_12] : memref<16x1xf32, #tpu.memory_space<vmem>>, vector<16x1xf32>
    %15 = vector.broadcast %14 : vector<16x1xf32> to vector<16x128xf32>
    %16 = arith.addf %13, %15 : vector<16x128xf32>
    %c0_13 = arith.constant 0 : index
    %c0_14 = arith.constant 0 : index
    %17 = vector.load %arg8[%c0_13, %c0_14] : memref<16x1xf32, #tpu.memory_space<vmem>>, vector<16x1xf32>
    %cst_15 = arith.constant dense<0xFF800000> : vector<16xf32>
    %18 = vector.multi_reduction <maximumf>, %16, %cst_15 [1] : vector<16x128xf32> to vector<16xf32>
    %19 = vector.shape_cast %18 : vector<16xf32> to vector<16x1xf32>
    %20 = arith.maximumf %17, %19 : vector<16x1xf32>
    %21 = arith.subf %17, %20 : vector<16x1xf32>
    %22 = math.exp %21 : vector<16x1xf32>
    %23 = vector.broadcast %20 : vector<16x1xf32> to vector<16x128xf32>
    %24 = arith.subf %16, %23 : vector<16x128xf32>
    %25 = math.exp %24 : vector<16x128xf32>
    %26 = arith.mulf %4, %25 : vector<16x128xf32>
    %c0_16 = arith.constant 0 : index
    %c0_17 = arith.constant 0 : index
    %27 = vector.load %arg8[%c0_16, %c0_17] : memref<16x1xf32, #tpu.memory_space<vmem>>, vector<16x1xf32>
    tpu.vector_store %arg8[%c0_16, %c0_17], %20 {strides = array<i32>} : memref<16x1xf32, #tpu.memory_space<vmem>>, vector<16x1xf32>,
    %c0_18 = arith.constant 0 : index
    %c0_19 = arith.constant 0 : index
    %28 = vector.load %arg9[%c0_18, %c0_19] : memref<16x1xf32, #tpu.memory_space<vmem>>, vector<16x1xf32>
    %29 = arith.mulf %22, %28 : vector<16x1xf32>
    %cst_20 = arith.constant dense<0.000000e+00> : vector<16xf32>
    %30 = vector.multi_reduction <add>, %25, %cst_20 [1] : vector<16x128xf32> to vector<16xf32>
    %31 = vector.shape_cast %30 : vector<16xf32> to vector<16x1xf32>
    %32 = arith.addf %29, %31 : vector<16x1xf32>
    %c0_21 = arith.constant 0 : index
    %c0_22 = arith.constant 0 : index
    %33 = vector.load %arg9[%c0_21, %c0_22] : memref<16x1xf32, #tpu.memory_space<vmem>>, vector<16x1xf32>
    tpu.vector_store %arg9[%c0_21, %c0_22], %32 {strides = array<i32>} : memref<16x1xf32, #tpu.memory_space<vmem>>, vector<16x1xf32>,
    %c0_23 = arith.constant 0 : index
    %c0_24 = arith.constant 0 : index
    %34 = vector.load %arg10[%c0_23, %c0_24] : memref<16x1xf32, #tpu.memory_space<vmem>>, vector<16x1xf32>
    %35 = arith.mulf %22, %34 : vector<16x1xf32>
    %cst_25 = arith.constant dense<0.000000e+00> : vector<16xf32>
    %36 = vector.multi_reduction <add>, %26, %cst_25 [1] : vector<16x128xf32> to vector<16xf32>
    %37 = vector.shape_cast %36 : vector<16xf32> to vector<16x1xf32>
    %38 = arith.addf %35, %37 : vector<16x1xf32>
    %c0_26 = arith.constant 0 : index
    %c0_27 = arith.constant 0 : index
    %39 = vector.load %arg10[%c0_26, %c0_27] : memref<16x1xf32, #tpu.memory_space<vmem>>, vector<16x1xf32>
    tpu.vector_store %arg10[%c0_26, %c0_27], %38 {strides = array<i32>} : memref<16x1xf32, #tpu.memory_space<vmem>>, vector<16x1xf32>,
    %40 = arith.mulf %22, %22 : vector<16x1xf32>
    %c0_28 = arith.constant 0 : index
    %c0_29 = arith.constant 0 : index
    %41 = vector.load %arg11[%c0_28, %c0_29] : memref<16x1xf32, #tpu.memory_space<vmem>>, vector<16x1xf32>
    %42 = arith.mulf %40, %41 : vector<16x1xf32>
    %43 = arith.mulf %26, %26 : vector<16x128xf32>
    %cst_30 = arith.constant dense<0.000000e+00> : vector<16xf32>
    %44 = vector.multi_reduction <add>, %43, %cst_30 [1] : vector<16x128xf32> to vector<16xf32>
    %45 = vector.shape_cast %44 : vector<16xf32> to vector<16x1xf32>
    %46 = arith.addf %42, %45 : vector<16x1xf32>
    %c0_31 = arith.constant 0 : index
    %c0_32 = arith.constant 0 : index
    %47 = vector.load %arg11[%c0_31, %c0_32] : memref<16x1xf32, #tpu.memory_space<vmem>>, vector<16x1xf32>
    tpu.vector_store %arg11[%c0_31, %c0_32], %46 {strides = array<i32>} : memref<16x1xf32, #tpu.memory_space<vmem>>, vector<16x1xf32>,
    %c2_i32 = arith.constant 2 : i32
    %48 = arith.cmpi eq, %arg1, %c2_i32 : i32
    %49 = arith.extui %48 : i1 to i32
    %c0_i32_33 = arith.constant 0 : i32
    %50 = arith.cmpi ne, %49, %c0_i32_33 : i32
    scf.if %50 {
      %c0_34 = arith.constant 0 : index
      %c0_35 = arith.constant 0 : index
      %51 = vector.load %arg9[%c0_34, %c0_35] : memref<16x1xf32, #tpu.memory_space<vmem>>, vector<16x1xf32>
      %52 = tpu.reciprocal %51 {approx = true} : vector<16x1xf32> -> vector<16x1xf32>
      %53 = arith.mulf %51, %52 : vector<16x1xf32>
      %cst_36 = arith.constant 2.000000e+00 : f32
      %54 = vector.broadcast %cst_36 : f32 to vector<16x1xf32>
      %55 = arith.subf %54, %53 : vector<16x1xf32>
      %56 = arith.mulf %52, %55 : vector<16x1xf32>
      %c0_37 = arith.constant 0 : index
      %c0_38 = arith.constant 0 : index
      %57 = vector.load %arg10[%c0_37, %c0_38] : memref<16x1xf32, #tpu.memory_space<vmem>>, vector<16x1xf32>
      %58 = arith.mulf %57, %56 : vector<16x1xf32>
      %c0_39 = arith.constant 0 : index
      %c0_40 = arith.constant 0 : index
      %59 = vector.load %arg11[%c0_39, %c0_40] : memref<16x1xf32, #tpu.memory_space<vmem>>, vector<16x1xf32>
      %60 = arith.mulf %56, %56 : vector<16x1xf32>
      %61 = arith.mulf %59, %60 : vector<16x1xf32>
      %62 = arith.mulf %58, %58 : vector<16x1xf32>
      %63 = arith.subf %61, %62 : vector<16x1xf32>
      %cst_41 = arith.constant 9.99999974E-6 : f32
      %64 = vector.broadcast %cst_41 : f32 to vector<16x1xf32>
      %65 = arith.maximumf %63, %64 : vector<16x1xf32>
      %66 = math.sqrt %65 : vector<16x1xf32>
      %c0_42 = arith.constant 0 : index
      %c0_43 = arith.constant 0 : index
      %c0_44 = arith.constant 0 : index
      %67 = vector.load %arg7[%c0_42, %c0_43, %c0_44] : memref<1x32x1xf32, #tpu.memory_space<vmem>>, vector<1x16x1xf32>
      %68 = vector.shape_cast %67 : vector<1x16x1xf32> to vector<16x1xf32>
      %69 = vector.shape_cast %58 : vector<16x1xf32> to vector<1x16x1xf32>
      tpu.vector_store %arg7[%c0_42, %c0_43, %c0_44], %69 {strides = array<i32>} : memref<1x32x1xf32, #tpu.memory_space<vmem>>, vector<1x16x1xf32>,
      %c0_45 = arith.constant 0 : index
      %c16 = arith.constant 16 : index
      %c0_46 = arith.constant 0 : index
      %70 = vector.load %arg7[%c0_45, %c16, %c0_46] : memref<1x32x1xf32, #tpu.memory_space<vmem>>, vector<1x16x1xf32>
      %71 = vector.shape_cast %70 : vector<1x16x1xf32> to vector<16x1xf32>
      %72 = vector.shape_cast %66 : vector<16x1xf32> to vector<1x16x1xf32>
      tpu.vector_store %arg7[%c0_45, %c16, %c0_46], %72 {strides = array<i32>} : memref<1x32x1xf32, #tpu.memory_space<vmem>>, vector<1x16x1xf32>,
    } else {
    }
    return
  }
  func.func @transform_0(%arg0: i32, %arg1: i32) -> (i32, i32, i32) {
    %c0_i32 = arith.constant 0 : i32
    %c0_i32_0 = arith.constant 0 : i32
    return %arg0, %c0_i32, %arg1 : i32, i32, i32
  }
  func.func @transform_1(%arg0: i32, %arg1: i32) -> (i32, i32) {
    %c0_i32 = arith.constant 0 : i32
    %c0_i32_0 = arith.constant 0 : i32
    %c0_i32_1 = arith.constant 0 : i32
    return %c0_i32, %c0_i32_0 : i32, i32
  }
  func.func @transform_2(%arg0: i32, %arg1: i32) -> (i32, i32) {
    %c0_i32 = arith.constant 0 : i32
    %c0_i32_0 = arith.constant 0 : i32
    %c0_i32_1 = arith.constant 0 : i32
    return %c0_i32, %c0_i32_0 : i32, i32
  }
  func.func @transform_3(%arg0: i32, %arg1: i32) -> (i32, i32) {
    %c0_i32 = arith.constant 0 : i32
    %c0_i32_0 = arith.constant 0 : i32
    %c0_i32_1 = arith.constant 0 : i32
    return %c0_i32, %c0_i32_0 : i32, i32
  }
  func.func @transform_4(%arg0: i32, %arg1: i32) -> (i32, i32) {
    %c0_i32 = arith.constant 0 : i32
    %c0_i32_0 = arith.constant 0 : i32
    %c0_i32_1 = arith.constant 0 : i32
    return %c0_i32, %c0_i32_0 : i32, i32
  }
  func.func @transform_5(%arg0: i32, %arg1: i32) -> (i32, i32, i32) {
    %c0_i32 = arith.constant 0 : i32
    %c0_i32_0 = arith.constant 0 : i32
    %c0_i32_1 = arith.constant 0 : i32
    return %arg0, %c0_i32, %c0_i32_0 : i32, i32, i32
  }
}

</mosaic_0001>

<llo_original>
// kernel: tpu_custom_call.1
$region0: #{tpu_custom_call.1}
  #allocation0 [shape = 'u32[]', space=smem, size = 0x4, offset = 0x4, fixed_abs, tag = 'smem constant byte address 0x4 - core index']
  #allocation1 [shape = 'u32[144,128]{1,0:T(1,128)}', space=vmem, size = 0x12000, scoped, tag = 'internal scratch']
  #allocation2 [shape = 'f32[16,1]{1,0:T(8,128)}', space=vmem, size = 0x2000, scoped, tag = 'scratch operand']
  #allocation3 [shape = 'f32[16,1]{1,0:T(8,128)}', space=vmem, size = 0x2000, scoped, tag = 'scratch operand']
  #allocation4 [shape = 'f32[16,1]{1,0:T(8,128)}', space=vmem, size = 0x2000, scoped, tag = 'scratch operand']
  #allocation5 [shape = 'f32[16,1]{1,0:T(8,128)}', space=vmem, size = 0x2000, scoped, tag = 'scratch operand']
  %s0 = inlined_call_operand.vmem [shape: f32[2,16,384], index: 0, kind: input, shape index: {}]
  %s1 = inlined_call_operand.vmem [shape: f32[32,16], index: 1, kind: input, shape index: {}]
  %s2 = inlined_call_operand.vmem [shape: f32[32,1], index: 2, kind: input, shape index: {}]
  %s3 = inlined_call_operand.hbm [shape: f32[16,32], index: 3, kind: input, shape index: {}]
  %s4 = inlined_call_operand.vmem [shape: f32[16,1], index: 4, kind: input, shape index: {}]
  %s5 = inlined_call_operand.vmem [shape: f32[2,32,1], index: 5, kind: output, shape index: {}]
  %s6 = sld [smem:[#allocation0]]
  $region103: #{tpu_custom_call.1} parent=0
    _
  %s8 = ssub.s32 1, %s6
  %s9 = scalar_select 0, %s8, %s6
  $region1: #{tpu_custom_call.1} parent=0
    #allocation6 [shape = 'u8[16384]{0}', space=vmem, size = 0x4000, scoped, tag = 'input window, operand 0']
    #allocation7 [shape = 'u8[8192]{0}', space=vmem, size = 0x2000, scoped, tag = 'input window, operand 3, single buffered']
    #allocation8 [shape = 's32[2]{0}', space=sflag, size = 0x8, scoped, tag = 'scoped memory for tpu_custom_call.1']
    %10 = vsyncpa [#allocation8], 0
    loop: start=0, step=1, limit=8
    $region2: #{tpu_custom_call.1} parent=1 // loop_pre_header
      _
    $region3: #{tpu_custom_call.1} parent=1 // loop_header
      %s12 = sphi 0, %s16
      %p13 = scmp.ge.s32.totalorder %s12, 8
      %s19 = sphi 0, %s31
      %s20 = sphi 0, %s27
      %s21 = sphi 0, %s19
      %s22 = sphi 0, %s20
      %s23 = sphi 0, %s21
      %s24 = sphi 0, %s22
      %s36 = sphi 0, %s38
      %s39 = sphi 0, %s36
      %s40 = sphi 0, %s39
      %s56 = sphi 0, %s40
      %s60 = sphi 0, %s60
      %s62 = sphi 0, %s60
      %s63 = sphi 0, %s62
      %s77 = sphi 0, %s63
      %s81 = sphi 0, %s81
      %s83 = sphi 0, %s81
      %s84 = sphi 0, %s83
      %s98 = sphi 0, %s84
      %s102 = sphi 0, %s102
      %s104 = sphi 0, %s102
      %s105 = sphi 0, %s104
      %s119 = sphi 0, %s105
      %s123 = sphi 0, %s123
      %s125 = sphi 0, %s123
      %s126 = sphi 0, %s125
      %s140 = sphi 0, %s126
      %s146 = sphi 0, %s148
      %s149 = sphi 0, %s146
      %s150 = sphi 0, %s149
      %s166 = sphi 0, %s150
    $region4: #{tpu_custom_call.1} parent=1 // loop_header_branch
      %15 = sbr.rel (%p13) target = $region8
    $region5: #{tpu_custom_call.1} parent=1 // loop_body
      %s17 = ssub.s32 %s12, 1
      %s18 = ssub.s32 %s12, 2
      %s25 = sadd.s32 1, %s20
      %p26 = scmp.ge.s32.totalorder %s25, 3
      %s27 = scalar_select %p26, 0, %s25
      %s28 = sadd.s32 1, %s19
      %s29 = scalar_select %p26, %s28, %s19
      %p30 = scmp.ge.s32.totalorder %s29, 2
      %s31 = scalar_select %p30, 0, %s29
      %s32 = ssub.s32 %s19, %s31
      %s33 = ssub.s32 %s20, %s27
      %s34 = sor.u32 %s32, %s33
      %p35 = scmp.eq.s32.totalorder %s34, 0
      %s37 = sadd.s32 %s36, 1
      %s38 = scalar_select %p35, %s36, %s37
      %p41 = pneg %p35
      %p42 = scmp.eq.s32.totalorder %s12, 5
      %p43 = por %p41, %p42
      %p44 = scmp.ne.s32.totalorder %s36, %s39
      %p45 = scmp.eq.s32.totalorder %s12, 0
      %p46 = por %p44, %p45
      %p47 = scmp.ne.s32.totalorder %s36, %s39
      %p48 = scmp.eq.s32.totalorder %s17, 5
      %p49 = por %p47, %p48
      %p50 = scmp.ne.s32.totalorder %s39, %s40
      %p51 = scmp.eq.s32.totalorder %s17, 0
      %p52 = por %p50, %p51
      %p53 = scmp.ne.s32.totalorder %s39, %s40
      %p54 = scmp.eq.s32.totalorder %s18, 5
      %p55 = por %p53, %p54
      %p57 = scmp.ne.s32.totalorder %s40, %s56
      %p58 = scmp.eq.s32.totalorder %s18, 0
      %p59 = por %p57, %p58
      %s61 = sadd.s32 %s60, 1
      %p64 = scmp.eq.s32.totalorder %s12, 5
      %p65 = scmp.ne.s32.totalorder %s60, %s62
      %p66 = scmp.eq.s32.totalorder %s12, 0
      %p67 = por %p65, %p66
      %p68 = scmp.ne.s32.totalorder %s60, %s62
      %p69 = scmp.eq.s32.totalorder %s17, 5
      %p70 = por %p68, %p69
      %p71 = scmp.ne.s32.totalorder %s62, %s63
      %p72 = scmp.eq.s32.totalorder %s17, 0
      %p73 = por %p71, %p72
      %p74 = scmp.ne.s32.totalorder %s62, %s63
      %p75 = scmp.eq.s32.totalorder %s18, 5
      %p76 = por %p74, %p75
      %p78 = scmp.ne.s32.totalorder %s63, %s77
      %p79 = scmp.eq.s32.totalorder %s18, 0
      %p80 = por %p78, %p79
      %s82 = sadd.s32 %s81, 1
      %p85 = scmp.eq.s32.totalorder %s12, 5
      %p86 = scmp.ne.s32.totalorder %s81, %s83
      %p87 = scmp.eq.s32.totalorder %s12, 0
      %p88 = por %p86, %p87
      %p89 = scmp.ne.s32.totalorder %s81, %s83
      %p90 = scmp.eq.s32.totalorder %s17, 5
      %p91 = por %p89, %p90
      %p92 = scmp.ne.s32.totalorder %s83, %s84
      %p93 = scmp.eq.s32.totalorder %s17, 0
      %p94 = por %p92, %p93
      %p95 = scmp.ne.s32.totalorder %s83, %s84
      %p96 = scmp.eq.s32.totalorder %s18, 5
      %p97 = por %p95, %p96
      %p99 = scmp.ne.s32.totalorder %s84, %s98
      %p100 = scmp.eq.s32.totalorder %s18, 0
      %p101 = por %p99, %p100
      %s103 = sadd.s32 %s102, 1
      %p106 = scmp.eq.s32.totalorder %s12, 5
      %p107 = scmp.ne.s32.totalorder %s102, %s104
      %p108 = scmp.eq.s32.totalorder %s12, 0
      %p109 = por %p107, %p108
      %p110 = scmp.ne.s32.totalorder %s102, %s104
      %p111 = scmp.eq.s32.totalorder %s17, 5
      %p112 = por %p110, %p111
      %p113 = scmp.ne.s32.totalorder %s104, %s105
      %p114 = scmp.eq.s32.totalorder %s17, 0
      %p115 = por %p113, %p114
      %p116 = scmp.ne.s32.totalorder %s104, %s105
      %p117 = scmp.eq.s32.totalorder %s18, 5
      %p118 = por %p116, %p117
      %p120 = scmp.ne.s32.totalorder %s105, %s119
      %p121 = scmp.eq.s32.totalorder %s18, 0
      %p122 = por %p120, %p121
      %s124 = sadd.s32 %s123, 1
      %p127 = scmp.eq.s32.totalorder %s12, 5
      %p128 = scmp.ne.s32.totalorder %s123, %s125
      %p129 = scmp.eq.s32.totalorder %s12, 0
      %p130 = por %p128, %p129
      %p131 = scmp.ne.s32.totalorder %s123, %s125
      %p132 = scmp.eq.s32.totalorder %s17, 5
      %p133 = por %p131, %p132
      %p134 = scmp.ne.s32.totalorder %s125, %s126
      %p135 = scmp.eq.s32.totalorder %s17, 0
      %p136 = por %p134, %p135
      %p137 = scmp.ne.s32.totalorder %s125, %s126
      %p138 = scmp.eq.s32.totalorder %s18, 5
      %p139 = por %p137, %p138
      %p141 = scmp.ne.s32.totalorder %s126, %s140
      %p142 = scmp.eq.s32.totalorder %s18, 0
      %p143 = por %p141, %p142
      %s144 = ssub.s32 %s19, %s31
      %p145 = scmp.eq.s32.totalorder %s144, 0
      %s147 = sadd.s32 %s146, 1
      %s148 = scalar_select %p145, %s146, %s147
      %p151 = pneg %p145
      %p152 = scmp.eq.s32.totalorder %s12, 5
      %p153 = por %p151, %p152
      %p154 = scmp.ne.s32.totalorder %s146, %s149
      %p155 = scmp.eq.s32.totalorder %s12, 0
      %p156 = por %p154, %p155
      %p157 = scmp.ne.s32.totalorder %s146, %s149
      %p158 = scmp.eq.s32.totalorder %s17, 5
      %p159 = por %p157, %p158
      %p160 = scmp.ne.s32.totalorder %s149, %s150
      %p161 = scmp.eq.s32.totalorder %s17, 0
      %p162 = por %p160, %p161
      %p163 = scmp.ne.s32.totalorder %s149, %s150
      %p164 = scmp.eq.s32.totalorder %s18, 5
      %p165 = por %p163, %p164
      %p167 = scmp.ne.s32.totalorder %s150, %s166
      %p168 = scmp.eq.s32.totalorder %s18, 0
      %p169 = por %p167, %p168
      %p170 = scmp.le.s32.totalorder 1, %s12
      %p171 = scmp.lt.s32.totalorder %s12, 7
      %p172 = pnand %p170, %p171
      %p173 = pneg %p172
      // Predicated region
      $region9: #{tpu_custom_call.1} parent=5 // pred_check
        _
      $region10: #{tpu_custom_call.1} parent=5 // pred_check_branch
        %175 = sbr.rel (%p172) target = $region12
      $region11: #{tpu_custom_call.1} parent=5 // pred_region
        %s176 = ssub.s32 %s12, 1
        // Predicated region
        $region13: #{tpu_custom_call.1} parent=11 // pred_check
          %p177 = pneg %p73
        $region14: #{tpu_custom_call.1} parent=11 // pred_check_branch
          %179 = sbr.rel (%p177) target = $region16
        $region15: #{tpu_custom_call.1} parent=11 // pred_region
          _
        $region16: #{tpu_custom_call.1} parent=11 // pred_fallthru
          _
        // Predicated region
        $region17: #{tpu_custom_call.1} parent=11 // pred_check
          %p180 = pneg %p94
        $region18: #{tpu_custom_call.1} parent=11 // pred_check_branch
          %182 = sbr.rel (%p180) target = $region20
        $region19: #{tpu_custom_call.1} parent=11 // pred_region
          _
        $region20: #{tpu_custom_call.1} parent=11 // pred_fallthru
          _
        // Predicated region
        $region21: #{tpu_custom_call.1} parent=11 // pred_check
          %p183 = pneg %p115
        $region22: #{tpu_custom_call.1} parent=11 // pred_check_branch
          %185 = sbr.rel (%p183) target = $region24
        $region23: #{tpu_custom_call.1} parent=11 // pred_region
          %s187 = ssub.s32 256, 256
          %188 = vsyncadd [#allocation8], %s187
          %s189 = sshll.u32 [#allocation7], 4
          %s190 = int_to_ptr.vmem [resolvable:$true] %s189
          %195 = dma.hbm_to_vmem [thread:$0]  %s3, 256, %s190, [#allocation8], 128, 128, 8
        $region24: #{tpu_custom_call.1} parent=11 // pred_fallthru
          _
        // Predicated region
        $region25: #{tpu_custom_call.1} parent=11 // pred_check
          %p196 = pneg %p136
        $region26: #{tpu_custom_call.1} parent=11 // pred_check_branch
          %198 = sbr.rel (%p196) target = $region28
        $region27: #{tpu_custom_call.1} parent=11 // pred_region
          _
        $region28: #{tpu_custom_call.1} parent=11 // pred_fallthru
          _
      $region12: #{tpu_custom_call.1} parent=5 // pred_fallthru
        _
      %p199 = scmp.lt.s32.totalorder %s12, 6
      // Predicated region
      $region29: #{tpu_custom_call.1} parent=5 // pred_check
        %p200 = pneg %p199
      $region30: #{tpu_custom_call.1} parent=5 // pred_check_branch
        %202 = sbr.rel (%p200) target = $region32
      $region31: #{tpu_custom_call.1} parent=5 // pred_region
        // Predicated region
        $region33: #{tpu_custom_call.1} parent=31 // pred_check
          %p203 = pneg %p46
        $region34: #{tpu_custom_call.1} parent=31 // pred_check_branch
          %205 = sbr.rel (%p203) target = $region36
        $region35: #{tpu_custom_call.1} parent=31 // pred_region
          %s206 = sand.u32 %s36, 1
          %s207 = sand.u32 %s36, 1
          %s208 = smul.addr %s207, 16
          %s209 = scalar_lea.vmem [#allocation6], %s208
          %s210 = smul.addr %s19, 6
          %s211 = sadd.s32 %s20, %s210
          %s212 = smul.addr %s211, 8
          %s213 = scalar_lea.vmem %s0, %s212
          // Predicated region
          $region37: #{tpu_custom_call.1} parent=35 // pred_check
            _
          $region38: #{tpu_custom_call.1} parent=35 // pred_check_branch
            %215 = sbr.rel (0) target = $region40
          $region39: #{tpu_custom_call.1} parent=35 // pred_region
            // Predicated region
            $region41: #{tpu_custom_call.1} parent=39 // pred_check
              _
            $region42: #{tpu_custom_call.1} parent=39 // pred_check_branch
              %217 = sbr.rel (0) target = $region44
            $region43: #{tpu_custom_call.1} parent=39 // pred_region
              // Predicated region
              $region56: #{tpu_custom_call.1} parent=43 // pred_check
                _
              $region57: #{tpu_custom_call.1} parent=43 // pred_check_branch
                %235 = sbr.rel (0) target = $region59
              $region58: #{tpu_custom_call.1} parent=43 // pred_region
                loop: start=0, step=1, limit=1
                $region60: #{tpu_custom_call.1} parent=58 // loop_pre_header
                  _
                $region61: #{tpu_custom_call.1} parent=58 // loop_header
                  %s237 = sphi 0, %s241
                  %p238 = scmp.ge.s32.totalorder %s237, 1
                  %s242 = sphi %s213, %s213
                  %s243 = sphi %s209, %s209
                $region62: #{tpu_custom_call.1} parent=58 // loop_header_branch
                  %240 = sbr.rel (%p238) target = $region66
                $region63: #{tpu_custom_call.1} parent=58 // loop_body
                  %v244 = vld [vmem:[%s242] sm:$0xff]
                  %245 = vst [vmem:[%s243] sm:$0xff] %v244
                  %v246 = vld [vmem:[%s242 + $0x18] sm:$0xff]
                  %247 = vst [vmem:[%s243 + $0x8] sm:$0xff] %v246
                $region64: #{tpu_custom_call.1} parent=58 // loop_footer
                  %s241 = sadd.s32 1, %s237
                $region65: #{tpu_custom_call.1} parent=58 // loop_footer_branch
                  %236 = sbr.rel target = $region61
                $region66: #{tpu_custom_call.1} parent=58 // loop_exit
                  _
              $region59: #{tpu_custom_call.1} parent=43 // pred_fallthru
                _
              // Predicated region
              $region67: #{tpu_custom_call.1} parent=43 // pred_check
                _
              $region68: #{tpu_custom_call.1} parent=43 // pred_check_branch
                %249 = sbr.rel target = $region70
              $region69: #{tpu_custom_call.1} parent=43 // pred_region
                _
              $region70: #{tpu_custom_call.1} parent=43 // pred_fallthru
                _
            $region44: #{tpu_custom_call.1} parent=39 // pred_fallthru
              _
            // Predicated region
            $region45: #{tpu_custom_call.1} parent=39 // pred_check
              _
            $region46: #{tpu_custom_call.1} parent=39 // pred_check_branch
              %219 = sbr.rel target = $region48
            $region47: #{tpu_custom_call.1} parent=39 // pred_region
              %s221 = ssub.s32 256, 1
              loop: start=0, step=1, limit=1
              $region49: #{tpu_custom_call.1} parent=47 // loop_pre_header
                _
              $region50: #{tpu_custom_call.1} parent=47 // loop_header
                %s223 = sphi 0, %s227
                %p224 = scmp.ge.s32.totalorder %s223, 1
                %s228 = sphi %s213, %s213
                %s229 = sphi %s209, %s209
              $region51: #{tpu_custom_call.1} parent=47 // loop_header_branch
                %226 = sbr.rel (%p224) target = $region55
              $region52: #{tpu_custom_call.1} parent=47 // loop_body
                %v230 = vld [vmem:[%s228] sm:%s221]
                %231 = vst [vmem:[%s229] sm:%s221] %v230
                %v232 = vld [vmem:[%s228 + $0x18] sm:%s221]
                %233 = vst [vmem:[%s229 + $0x8] sm:%s221] %v232
              $region53: #{tpu_custom_call.1} parent=47 // loop_footer
                %s227 = sadd.s32 1, %s223
              $region54: #{tpu_custom_call.1} parent=47 // loop_footer_branch
                %222 = sbr.rel target = $region50
              $region55: #{tpu_custom_call.1} parent=47 // loop_exit
                _
            $region48: #{tpu_custom_call.1} parent=39 // pred_fallthru
              _
          $region40: #{tpu_custom_call.1} parent=35 // pred_fallthru
            _
          %250 = vnop
        $region36: #{tpu_custom_call.1} parent=31 // pred_fallthru
          _
      $region32: #{tpu_custom_call.1} parent=5 // pred_fallthru
        _
      %p251 = scmp.le.s32.totalorder 1, %s12
      %p252 = scmp.lt.s32.totalorder %s12, 7
      %p253 = pnand %p251, %p252
      %p254 = pneg %p253
      // Predicated region
      $region71: #{tpu_custom_call.1} parent=5 // pred_check
        _
      $region72: #{tpu_custom_call.1} parent=5 // pred_check_branch
        %256 = sbr.rel (%p253) target = $region74
      $region73: #{tpu_custom_call.1} parent=5 // pred_region
        %s257 = ssub.s32 %s12, 1
        %s258 = sand.u32 %s39, 1
        %s259 = sand.u32 %s39, 1
        %s260 = smul.addr %s259, 16
        %s261 = scalar_lea.vmem [#allocation6], %s260
        // Predicated region
        $region75: #{tpu_custom_call.1} parent=73 // pred_check
          %p262 = pneg %p52
        $region76: #{tpu_custom_call.1} parent=73 // pred_check_branch
          %264 = sbr.rel (%p262) target = $region78
        $region77: #{tpu_custom_call.1} parent=73 // pred_region
          _
        $region78: #{tpu_custom_call.1} parent=73 // pred_fallthru
          _
        // Predicated region
        $region79: #{tpu_custom_call.1} parent=73 // pred_check
          %p265 = pneg %p115
        $region80: #{tpu_custom_call.1} parent=73 // pred_check_branch
          %267 = sbr.rel (%p265) target = $region82
        $region81: #{tpu_custom_call.1} parent=73 // pred_region
          %268 = dma.done [#allocation8], 256
        $region82: #{tpu_custom_call.1} parent=73 // pred_fallthru
          _
        %s269 = sand.u32 %s39, 1
        %s270 = sand.u32 %s39, 1
        %s271 = smul.addr %s270, 16
        %s272 = scalar_lea.vmem [#allocation6], %s271
        %p273 = pneg %p52
        %p274 = pneg %p49
        %p275 = pneg %p73
        %p276 = pneg %p70
        %p277 = pneg %p94
        %p278 = pneg %p91
        %p279 = pneg %p115
        %p280 = pneg %p112
        %p281 = pneg %p136
        %p282 = pneg %p133
        %p283 = pneg %p162
        %p284 = pneg %p159
        %p285 = scmp.lt.s32.totalorder %s21, 1
        %s286 = scalar_select %p285, %s21, 1
        %s287 = smul.addr %s286, 4
        %s288 = smul.addr %s287, 8
        %s289 = scalar_lea.vmem %s5, %s288
        %p290 = scmp.lt.s32.totalorder %s21, 1
        %s291 = scalar_select %p290, %s21, 1
        %s292 = smul.addr %s291, 4
        %s293 = smul.addr %s292, 8
        %s294 = scalar_lea.vmem %s5, %s293
        %p295 = scmp.eq.s32.totalorder %s22, 0
        // Predicated region
        $region83: #{tpu_custom_call.1} parent=73 // pred_check
          %p296 = pneg %p295
        $region84: #{tpu_custom_call.1} parent=73 // pred_check_branch
          %298 = sbr.rel (%p296) target = $region86
        $region85: #{tpu_custom_call.1} parent=73 // pred_region
          %vm299 = vcmask 7168
          %300 = vst.msk [vmem:[#allocation2] sm:$0xff] %vm299, -inf
          %301 = vst.msk [vmem:[#allocation2 + $0x8] sm:$0xff] %vm299, -inf
          %302 = vst.msk [vmem:[#allocation3] sm:$0xff] %vm299, 0.0
          %303 = vst.msk [vmem:[#allocation3 + $0x8] sm:$0xff] %vm299, 0.0
          %304 = vst.msk [vmem:[#allocation4] sm:$0xff] %vm299, 0.0
          %305 = vst.msk [vmem:[#allocation4 + $0x8] sm:$0xff] %vm299, 0.0
          %306 = vst.msk [vmem:[#allocation5] sm:$0xff] %vm299, 0.0
          %307 = vst.msk [vmem:[#allocation5 + $0x8] sm:$0xff] %vm299, 0.0
        $region86: #{tpu_custom_call.1} parent=73 // pred_fallthru
          _
        %v308 = vld [vmem:[%s261] sm:$0xff]
        %v309 = vld [vmem:[%s261 + $0x8] sm:$0xff]
        %v310 = vld [vmem:[%s1] sm:$0xff]
        %v311 = vld [vmem:[%s1 + $0x8] sm:$0xff]
        %v312 = vld [vmem:[%s1 + $0x10] sm:$0xff]
        %v313 = vld [vmem:[%s1 + $0x18] sm:$0xff]
        %v314 = vld [vmem:[%s2] sm:$0xff]
        %v315 = vld [vmem:[%s2 + $0x8] sm:$0xff]
        %v316 = vld [vmem:[%s2 + $0x10] sm:$0xff]
        %v317 = vld [vmem:[%s2 + $0x18] sm:$0xff]
        %319 = vset.pattern.permute.xlu0 0
        %320 = vperm.xlu0 %319, %v314
        %v321 = vpop.permute.xlu0 %320
        %324 = vset.pattern.permute.xlu0 0
        %325 = vperm.xlu0 %324, %v315
        %v326 = vpop.permute.xlu0 %325
        %329 = vset.pattern.permute.xlu0 0
        %330 = vperm.xlu0 %329, %v316
        %v331 = vpop.permute.xlu0 %330
        %334 = vset.pattern.permute.xlu0 0
        %335 = vperm.xlu0 %334, %v317
        %v336 = vpop.permute.xlu0 %335
        %vm338 = vcmask 130048
        %v340 = vsel %vm338, %v310, 0
        %v343 = vsel %vm338, %v311, 0
        %v346 = vsel %vm338, %v312, 0
        %v349 = vsel %vm338, %v313, 0
        %351 = vmatprep.subr.mxu0 0.0
        %352 = vmatpush1.msra.mxu0 0.0
        %353 = vmatprep.subr.mxu0 0.0
        %354 = vmatpush1.msra.mxu0 0.0
        %355 = vmatprep.subr.mxu0 0.0
        %356 = vmatpush1.msra.mxu0 0.0
        %357 = vmatprep.subr.mxu0 0.0
        %358 = vmatpush1.msra.mxu0 0.0
        %359 = vmatprep.subr.mxu0 0.0
        %360 = vmatpush1.msra.mxu0 0.0
        %361 = vmatprep.subr.mxu0 0.0
        %362 = vmatpush1.msra.mxu0 0.0
        %363 = vmatprep.subr.mxu0 0.0
        %364 = vmatpush1.msra.mxu0 0.0
        %365 = vmatprep.subr.mxu0 0.0
        %366 = vmatpush1.msra.mxu0 0.0
        %367 = vmatprep.subr.mxu0 0.0
        %368 = vmatpush1.msra.mxu0 0.0
        %369 = vmatprep.subr.mxu0 0.0
        %370 = vmatpush1.msra.mxu0 0.0
        %371 = vmatprep.subr.mxu0 0.0
        %372 = vmatpush1.msra.mxu0 0.0
        %373 = vmatprep.subr.mxu0 0.0
        %374 = vmatpush1.msra.mxu0 0.0
        %375 = vmatprep.subr.mxu0 0.0
        %376 = vmatpush1.msra.mxu0 0.0
        %377 = vmatprep.subr.mxu0 0.0
        %378 = vmatpush1.msra.mxu0 0.0
        %379 = vmatprep.subr.mxu0 0.0
        %380 = vmatpush1.msra.mxu0 %v309
        %381 = vmatprep.subr.mxu0 0.0
        %382 = vmatpush1.msra.mxu0 %v308
        %383 = vmatprep.subr.mxu0 0.0
        %384 = vmatpush2.msra.mxu0 0.0
        %385 = vmatprep.subr.mxu0 0.0
        %386 = vmatpush2.msra.mxu0 0.0
        %387 = vmatprep.subr.mxu0 0.0
        %388 = vmatpush2.msra.mxu0 0.0
        %389 = vmatprep.subr.mxu0 0.0
        %390 = vmatpush2.msra.mxu0 0.0
        %391 = vmatprep.subr.mxu0 0.0
        %392 = vmatpush2.msra.mxu0 0.0
        %393 = vmatprep.subr.mxu0 0.0
        %394 = vmatpush2.msra.mxu0 0.0
        %395 = vmatprep.subr.mxu0 0.0
        %396 = vmatpush2.msra.mxu0 0.0
        %397 = vmatprep.subr.mxu0 0.0
        %398 = vmatpush2.msra.mxu0 0.0
        %399 = vmatprep.subr.mxu0 0.0
        %400 = vmatpush2.msra.mxu0 0.0
        %401 = vmatprep.subr.mxu0 0.0
        %402 = vmatpush2.msra.mxu0 0.0
        %403 = vmatprep.subr.mxu0 0.0
        %404 = vmatpush2.msra.mxu0 0.0
        %405 = vmatprep.subr.mxu0 0.0
        %406 = vmatpush2.msra.mxu0 0.0
        %407 = vmatprep.subr.mxu0 0.0
        %408 = vmatpush2.msra.mxu0 0.0
        %409 = vmatprep.subr.mxu0 0.0
        %410 = vmatpush2.msra.mxu0 0.0
        %411 = vmatprep.subr.mxu0 0.0
        %412 = vmatpush2.msra.mxu0 0.0
        %413 = vmatprep.subr.mxu0 0.0
        %414 = vmatpush2.msra.mxu0 0.0
        %415 = vmatprep.mubr.f32.mxu0 0.0
        %416 = vmatmul.mubr.f32.gmra.mxu0 %v340
        %v417 = vpop.f32.mrf.mxu0
        %v418 = vadd.f32 %v321, %v417
        %v419 = vpop.f32.mrf.mxu0
        %420 = vmatprep.mubr.f32.mxu0 0.0
        %421 = vmatmul.mubr.f32.gmra.mxu0 %v343
        %v422 = vpop.f32.mrf.mxu0
        %v423 = vadd.f32 %v326, %v422
        %v424 = vpop.f32.mrf.mxu0
        %425 = vmatprep.mubr.f32.mxu0 0.0
        %426 = vmatmul.mubr.f32.gmra.mxu0 %v346
        %v427 = vpop.f32.mrf.mxu0
        %v428 = vadd.f32 %v331, %v427
        %v429 = vpop.f32.mrf.mxu0
        %430 = vmatprep.mubr.f32.mxu0 0.0
        %431 = vmatmul.mubr.f32.gmra.mxu0 %v349
        %v432 = vpop.f32.mrf.mxu0
        %v433 = vadd.f32 %v336, %v432
        %v434 = vpop.f32.mrf.mxu0
        %435 = vdwg.mxu0
        %v436 = vmax.f32 %v418, 0.0
        %v437 = vmax.f32 %v423, 0.0
        %v438 = vmax.f32 %v428, 0.0
        %v439 = vmax.f32 %v433, 0.0
        %v440 = vld [vmem:[#allocation7] sm:$0xff]
        %v441 = vld [vmem:[#allocation7 + $0x8] sm:$0xff]
        %v442 = vld [vmem:[%s4] sm:$0xff]
        %v443 = vld [vmem:[%s4 + $0x8] sm:$0xff]
        %445 = vset.pattern.permute.xlu0 0
        %446 = vperm.xlu0 %445, %v442
        %v447 = vpop.permute.xlu0 %446
        %450 = vset.pattern.permute.xlu0 0
        %451 = vperm.xlu0 %450, %v443
        %v452 = vpop.permute.xlu0 %451
        %vm454 = vcmask 261120
        %v456 = vsel %vm454, %v440, 0
        %v459 = vsel %vm454, %v441, 0
        %461 = vmatprep.subr.mxu0 0.0
        %462 = vmatpush1.msra.mxu0 0.0
        %463 = vmatprep.subr.mxu0 0.0
        %464 = vmatpush1.msra.mxu0 0.0
        %465 = vmatprep.subr.mxu0 0.0
        %466 = vmatpush1.msra.mxu0 0.0
        %467 = vmatprep.subr.mxu0 0.0
        %468 = vmatpush1.msra.mxu0 0.0
        %469 = vmatprep.subr.mxu0 0.0
        %470 = vmatpush1.msra.mxu0 0.0
        %471 = vmatprep.subr.mxu0 0.0
        %472 = vmatpush1.msra.mxu0 0.0
        %473 = vmatprep.subr.mxu0 0.0
        %474 = vmatpush1.msra.mxu0 0.0
        %475 = vmatprep.subr.mxu0 0.0
        %476 = vmatpush1.msra.mxu0 0.0
        %477 = vmatprep.subr.mxu0 0.0
        %478 = vmatpush1.msra.mxu0 0.0
        %479 = vmatprep.subr.mxu0 0.0
        %480 = vmatpush1.msra.mxu0 0.0
        %481 = vmatprep.subr.mxu0 0.0
        %482 = vmatpush1.msra.mxu0 0.0
        %483 = vmatprep.subr.mxu0 0.0
        %484 = vmatpush1.msra.mxu0 0.0
        %485 = vmatprep.subr.mxu0 0.0
        %486 = vmatpush1.msra.mxu0 %v439
        %487 = vmatprep.subr.mxu0 0.0
        %488 = vmatpush1.msra.mxu0 %v438
        %489 = vmatprep.subr.mxu0 0.0
        %490 = vmatpush1.msra.mxu0 %v437
        %491 = vmatprep.subr.mxu0 0.0
        %492 = vmatpush1.msra.mxu0 %v436
        %493 = vmatprep.subr.mxu0 0.0
        %494 = vmatpush2.msra.mxu0 0.0
        %495 = vmatprep.subr.mxu0 0.0
        %496 = vmatpush2.msra.mxu0 0.0
        %497 = vmatprep.subr.mxu0 0.0
        %498 = vmatpush2.msra.mxu0 0.0
        %499 = vmatprep.subr.mxu0 0.0
        %500 = vmatpush2.msra.mxu0 0.0
        %501 = vmatprep.subr.mxu0 0.0
        %502 = vmatpush2.msra.mxu0 0.0
        %503 = vmatprep.subr.mxu0 0.0
        %504 = vmatpush2.msra.mxu0 0.0
        %505 = vmatprep.subr.mxu0 0.0
        %506 = vmatpush2.msra.mxu0 0.0
        %507 = vmatprep.subr.mxu0 0.0
        %508 = vmatpush2.msra.mxu0 0.0
        %509 = vmatprep.subr.mxu0 0.0
        %510 = vmatpush2.msra.mxu0 0.0
        %511 = vmatprep.subr.mxu0 0.0
        %512 = vmatpush2.msra.mxu0 0.0
        %513 = vmatprep.subr.mxu0 0.0
        %514 = vmatpush2.msra.mxu0 0.0
        %515 = vmatprep.subr.mxu0 0.0
        %516 = vmatpush2.msra.mxu0 0.0
        %517 = vmatprep.subr.mxu0 0.0
        %518 = vmatpush2.msra.mxu0 0.0
        %519 = vmatprep.subr.mxu0 0.0
        %520 = vmatpush2.msra.mxu0 0.0
        %521 = vmatprep.subr.mxu0 0.0
        %522 = vmatpush2.msra.mxu0 0.0
        %523 = vmatprep.subr.mxu0 0.0
        %524 = vmatpush2.msra.mxu0 0.0
        %525 = vmatprep.mubr.f32.mxu0 0.0
        %526 = vmatmul.mubr.f32.gmra.mxu0 %v456
        %v527 = vpop.f32.mrf.mxu0
        %v528 = vadd.f32 %v447, %v527
        %v529 = vpop.f32.mrf.mxu0
        %530 = vmatprep.mubr.f32.mxu0 0.0
        %531 = vmatmul.mubr.f32.gmra.mxu0 %v459
        %v532 = vpop.f32.mrf.mxu0
        %v533 = vadd.f32 %v452, %v532
        %v534 = vpop.f32.mrf.mxu0
        %535 = vdwg.mxu0
        %v536 = vld [vmem:[#allocation2] sm:$0xff]
        %v537 = vld [vmem:[#allocation2 + $0x8] sm:$0xff]
        %538 = vmax.xlane.f32.xlu0 %v528
        %v539 = vpop.xlane.xlu0 %538
        %540 = vmax.xlane.f32.xlu0 %v533
        %v541 = vpop.xlane.xlu0 %540
        %v542 = vmax.f32 %v536, %v539
        %v543 = vmax.f32 %v537, %v541
        %v544 = vsub.f32 %v536, %v542
        %v545 = vsub.f32 %v537, %v543
        %v546 = vmul.f32 %v544, 1.442695
        %v547 = vpow.pop %v546
        %v548 = vmul.f32 %v545, 1.442695
        %v549 = vpow.pop %v548
        %551 = vset.pattern.permute.xlu0 0
        %552 = vperm.xlu0 %551, %v542
        %v553 = vpop.permute.xlu0 %552
        %556 = vset.pattern.permute.xlu0 0
        %557 = vperm.xlu0 %556, %v543
        %v558 = vpop.permute.xlu0 %557
        %v560 = vsub.f32 %v528, %v553
        %v561 = vsub.f32 %v533, %v558
        %v562 = vmul.f32 %v560, 1.442695
        %v563 = vpow.pop %v562
        %v564 = vmul.f32 %v561, 1.442695
        %v565 = vpow.pop %v564
        %v566 = vmul.f32 %v308, %v563
        %v567 = vmul.f32 %v309, %v565
        %vm568 = vcmask 7168
        %569 = vst.msk [vmem:[#allocation2] sm:$0xff] %vm568, %v542
        %570 = vst.msk [vmem:[#allocation2 + $0x8] sm:$0xff] %vm568, %v543
        %v571 = vld [vmem:[#allocation3] sm:$0xff]
        %v572 = vld [vmem:[#allocation3 + $0x8] sm:$0xff]
        %v573 = vmul.f32 %v547, %v571
        %v574 = vmul.f32 %v549, %v572
        %575 = vadd.xlane.f32.xlu0 %v563
        %v576 = vpop.xlane.xlu0 %575
        %577 = vadd.xlane.f32.xlu0 %v565
        %v578 = vpop.xlane.xlu0 %577
        %v579 = vadd.f32 %v573, %v576
        %v580 = vadd.f32 %v574, %v578
        %581 = vst.msk [vmem:[#allocation3] sm:$0xff] %vm568, %v579
        %582 = vst.msk [vmem:[#allocation3 + $0x8] sm:$0xff] %vm568, %v580
        %v583 = vld [vmem:[#allocation4] sm:$0xff]
        %v584 = vld [vmem:[#allocation4 + $0x8] sm:$0xff]
        %v585 = vmul.f32 %v547, %v583
        %v586 = vmul.f32 %v549, %v584
        %587 = vadd.xlane.f32.xlu0 %v566
        %v588 = vpop.xlane.xlu0 %587
        %589 = vadd.xlane.f32.xlu0 %v567
        %v590 = vpop.xlane.xlu0 %589
        %v591 = vadd.f32 %v585, %v588
        %v592 = vadd.f32 %v586, %v590
        %593 = vst.msk [vmem:[#allocation4] sm:$0xff] %vm568, %v591
        %594 = vst.msk [vmem:[#allocation4 + $0x8] sm:$0xff] %vm568, %v592
        %v595 = vmul.f32 %v547, %v547
        %v596 = vmul.f32 %v549, %v549
        %v597 = vld [vmem:[#allocation5] sm:$0xff]
        %v598 = vld [vmem:[#allocation5 + $0x8] sm:$0xff]
        %v599 = vmul.f32 %v595, %v597
        %v600 = vmul.f32 %v596, %v598
        %v601 = vmul.f32 %v566, %v566
        %v602 = vmul.f32 %v567, %v567
        %603 = vadd.xlane.f32.xlu0 %v601
        %v604 = vpop.xlane.xlu0 %603
        %605 = vadd.xlane.f32.xlu0 %v602
        %v606 = vpop.xlane.xlu0 %605
        %v607 = vadd.f32 %v599, %v604
        %v608 = vadd.f32 %v600, %v606
        %609 = vst.msk [vmem:[#allocation5] sm:$0xff] %vm568, %v607
        %610 = vst.msk [vmem:[#allocation5 + $0x8] sm:$0xff] %vm568, %v608
        %p611 = scmp.eq.s32.totalorder %s22, 2
        // Predicated region
        $region87: #{tpu_custom_call.1} parent=73 // pred_check
          %p612 = pneg %p611
        $region88: #{tpu_custom_call.1} parent=73 // pred_check_branch
          %614 = sbr.rel (%p612) target = $region90
        $region89: #{tpu_custom_call.1} parent=73 // pred_region
          %v615 = vld [vmem:[#allocation3] sm:$0xff]
          %v616 = vld [vmem:[#allocation3 + $0x8] sm:$0xff]
          %v617 = vrcp.pop %v615
          %v618 = vrcp.pop %v616
          %v619 = vmul.f32 %v615, %v617
          %v620 = vmul.f32 %v616, %v618
          %v621 = vsub.f32 2.0, %v619
          %v622 = vsub.f32 2.0, %v620
          %v623 = vmul.f32 %v617, %v621
          %v624 = vmul.f32 %v618, %v622
          %v625 = vld [vmem:[#allocation4] sm:$0xff]
          %v626 = vld [vmem:[#allocation4 + $0x8] sm:$0xff]
          %v627 = vmul.f32 %v625, %v623
          %v628 = vmul.f32 %v626, %v624
          %v629 = vld [vmem:[#allocation5] sm:$0xff]
          %v630 = vld [vmem:[#allocation5 + $0x8] sm:$0xff]
          %v631 = vmul.f32 %v623, %v623
          %v632 = vmul.f32 %v624, %v624
          %v633 = vmul.f32 %v629, %v631
          %v634 = vmul.f32 %v630, %v632
          %v635 = vmul.f32 %v627, %v627
          %v636 = vmul.f32 %v628, %v628
          %v637 = vsub.f32 %v633, %v635
          %v638 = vsub.f32 %v634, %v636
          %v639 = vmax.f32 %v637, 1e-05
          %v640 = vmax.f32 %v638, 1e-05
          %v641 = vrsqrt.pop %v639
          %v642 = vmul.f32 %v639, %v641
          %vm643 = vcmp.eq.f32.partialorder %v639, inf
          %v644 = vsel %vm643, %v639, %v642
          %vm645 = vcmp.eq.f32.partialorder %v639, 0.0
          %v646 = vand.u32 %v639, 2147483648
          %v647 = vsel %vm645, %v646, %v644
          %v648 = vrsqrt.pop %v640
          %v649 = vmul.f32 %v640, %v648
          %vm650 = vcmp.eq.f32.partialorder %v640, inf
          %v651 = vsel %vm650, %v640, %v649
          %vm652 = vcmp.eq.f32.partialorder %v640, 0.0
          %v653 = vand.u32 %v640, 2147483648
          %v654 = vsel %vm652, %v653, %v651
          %655 = vst.msk [vmem:[%s294] sm:$0xff] %vm568, %v627
          %656 = vst.msk [vmem:[%s294 + $0x8] sm:$0xff] %vm568, %v628
          %657 = vst.msk [vmem:[%s294 + $0x10] sm:$0xff] %vm568, %v647
          %658 = vst.msk [vmem:[%s294 + $0x18] sm:$0xff] %vm568, %v654
        $region90: #{tpu_custom_call.1} parent=73 // pred_fallthru
          _
        %p659 = scmp.lt.s32.totalorder %s21, 1
        %s660 = scalar_select %p659, %s21, 1
        %s661 = smul.addr %s660, 4
        %s662 = smul.addr %s661, 8
        %s663 = scalar_lea.vmem %s5, %s662
        // Predicated region
        $region91: #{tpu_custom_call.1} parent=73 // pred_check
          %p664 = pneg %p159
        $region92: #{tpu_custom_call.1} parent=73 // pred_check_branch
          %666 = sbr.rel (%p664) target = $region94
        $region93: #{tpu_custom_call.1} parent=73 // pred_region
          _
        $region94: #{tpu_custom_call.1} parent=73 // pred_fallthru
          _
      $region74: #{tpu_custom_call.1} parent=5 // pred_fallthru
        _
      %p667 = scmp.le.s32.totalorder 2, %s12
      // Predicated region
      $region95: #{tpu_custom_call.1} parent=5 // pred_check
        %p668 = pneg %p667
      $region96: #{tpu_custom_call.1} parent=5 // pred_check_branch
        %670 = sbr.rel (%p668) target = $region98
      $region97: #{tpu_custom_call.1} parent=5 // pred_region
        %s671 = ssub.s32 %s12, 2
        // Predicated region
        $region99: #{tpu_custom_call.1} parent=97 // pred_check
          %p672 = pneg %p165
        $region100: #{tpu_custom_call.1} parent=97 // pred_check_branch
          %674 = sbr.rel (%p672) target = $region102
        $region101: #{tpu_custom_call.1} parent=97 // pred_region
          %p675 = scmp.lt.s32.totalorder %s23, 1
          %s676 = scalar_select %p675, %s23, 1
          %s677 = smul.addr %s676, 4
          %s678 = smul.addr %s677, 8
          %s679 = scalar_lea.vmem %s5, %s678
        $region102: #{tpu_custom_call.1} parent=97 // pred_fallthru
          _
      $region98: #{tpu_custom_call.1} parent=5 // pred_fallthru
        _
    $region6: #{tpu_custom_call.1} parent=1 // loop_footer
      %s16 = sadd.s32 1, %s12
    $region7: #{tpu_custom_call.1} parent=1 // loop_footer_branch
      %11 = sbr.rel target = $region3
    $region8: #{tpu_custom_call.1} parent=1 // loop_exit
      _
    %680 = vsyncpa [#allocation8], 1
    %s681 = scalar_lea.sflag [#allocation8], 1
    %682 = vsyncpa %s681, 1

</llo_original>
